<compile_context>
chip_gen: v7x
topology: tpu7x:2x2x1
jax: 0.10.0
libtpu: 0.0.40
codegen_flags: <defaults>
</compile_context>

<pallas_src>
import functools

import jax
import jax.numpy as jnp
from jax.experimental import pallas as pl
from jax.experimental.pallas import tpu as pltpu


def _round_up(x, m):
    return ((x + m - 1) // m) * m


def output_head_kernel(x_ref, w_ref, b_ref, o_ref):
    # x_ref: (TB, in_dim_p) f32   batch tile of flattened activations
    # w_ref: (1, in_dim_p)  f32   folded weight row  (w1 @ w2)^T
    # b_ref: (1, 1)         f32   folded bias        b1 @ w2 + b2
    # o_ref: (TB, 1)        f32
    # Both Linears folded into one affine map: VPU multiply + cross-lane reduce.
    y = jnp.sum(x_ref[...] * w_ref[...], axis=1, keepdims=True) + b_ref[...]
    # F.normalize(y, dim=1, eps=1e-12) with out_dim == 1: ||y||_2 along dim 1 == |y|.
    o_ref[...] = y / jnp.maximum(jnp.abs(y), 1e-12)


def fold_output_head_params(w1, b1, w2, b2):
    """Fold Linear(in_dim, n_hid) -> Linear(n_hid, 1) (no activation between
    them in the module) into a single affine map.  Call ONCE at init.

    Weights are stored (in, out), i.e. transposed vs. torch's (out, in).
    Returns (w_row, b_eff) with shapes (1, in_dim) and (1, 1), both f32."""
    assert w2.shape[1] == 1, "kernel specialized for the module default out_dim=1"
    w_row = (w1.astype(jnp.float32) @ w2.astype(jnp.float32)).reshape(1, -1)
    b_eff = (b1.astype(jnp.float32) @ w2.astype(jnp.float32)
             + b2.astype(jnp.float32)).reshape(1, 1)
    return w_row, b_eff


@functools.partial(jax.jit, static_argnames=("batch_tile",))
def output_head_forward(x_nchw, w_row, b_eff, *, batch_tile=1024):
    """x_nchw: (B, C, H, W) f32; (w_row, b_eff) from fold_output_head_params.
    Returns (B, 1) f32 (same as the PyTorch module's forward)."""
    B = x_nchw.shape[0]
    x_flat = x_nchw.reshape(B, -1).astype(jnp.float32)   # torch .view(B, -1)
    in_dim = x_flat.shape[1]
    assert w_row.shape == (1, in_dim)

    # ---- static tiling decisions --------------------------------------------
    in_dim_p = _round_up(in_dim, 128)          # lane pad only if actually needed
    B_p = _round_up(B, 8)                      # sublane-align the batch
    TB = min(_round_up(batch_tile, 8), B_p)    # batch tile (multiple of 8)
    # Keep the double-buffered x tile within ~24 MiB so it fits every
    # generation's VMEM (v7x: 64 MiB physical / 32 MiB default scoped).
    while TB > 8 and 2 * TB * in_dim_p * 4 > (24 << 20):
        TB = max(8, _round_up(TB // 2, 8))
    # v7x megacore: keep >= 2 blocks on the "parallel" axis when the batch permits.
    if TB >= B_p and B_p >= 16:
        TB = _round_up((B_p + 1) // 2, 8)
    B_p = _round_up(B_p, TB)                   # exact blocks, no OOB tiles
    n_blocks = B_p // TB

    # ---- operand prep (fuses under jit; no-op when already aligned) ---------
    if (B_p, in_dim_p) != (B, in_dim):
        x_p = jnp.zeros((B_p, in_dim_p), jnp.float32).at[:B, :in_dim].set(x_flat)
    else:
        x_p = x_flat
    if in_dim_p != in_dim:
        w_p = jnp.zeros((1, in_dim_p), jnp.float32).at[:, :in_dim].set(
            w_row.astype(jnp.float32))
    else:
        w_p = w_row.astype(jnp.float32)
    b_p = b_eff.reshape(1, 1).astype(jnp.float32)

    out_p = pl.pallas_call(
        output_head_kernel,
        out_shape=jax.ShapeDtypeStruct((B_p, 1), jnp.float32),
        grid=(n_blocks,),
        in_specs=[
            pl.BlockSpec((TB, in_dim_p), lambda i: (i, 0)),   # batch-tiled x
            pl.BlockSpec((1, in_dim_p), lambda i: (0, 0)),    # folded weight row
            pl.BlockSpec((1, 1), lambda i: (0, 0)),           # folded bias
        ],
        out_specs=pl.BlockSpec((TB, 1), lambda i: (i, 0)),
        compiler_params=pltpu.CompilerParams(
            dimension_semantics=("parallel",),
            vmem_limit_bytes=32 * 1024 * 1024),
    )(x_p, w_p, b_p)
    return out_p[:B]


if __name__ == "__main__":
    # Module hyper-params (PyTorch defaults: n_hid=200, out_dim=1).
    B, C, H, W = 2, 4, 16, 16
    in_dim = C * H * W          # Flatten => 4*16*16 = 1024
    n_hid = 200
    out_dim = 1

    key = jax.random.PRNGKey(0)
    kx, kw1, kw2 = jax.random.split(key, 3)

    x = jax.random.normal(kx, (B, C, H, W), dtype=jnp.float32)

    # initilize(): weights ~ N(0, 0.01), biases = 0.
    # (stored transposed vs. torch's (out, in) so the math is x @ W)
    w1 = 0.01 * jax.random.normal(kw1, (in_dim, n_hid), dtype=jnp.float32)
    b1 = jnp.zeros((n_hid,), dtype=jnp.float32)
    w2 = 0.01 * jax.random.normal(kw2, (n_hid, out_dim), dtype=jnp.float32)
    b2 = jnp.zeros((out_dim,), dtype=jnp.float32)

    # One-time init: fold the two Linears (valid: no activation between them).
    w_row, b_eff = fold_output_head_params(w1, b1, w2, b2)

    out = output_head_forward(x, w_row, b_eff)
    out = jax.block_until_ready(out)

    # Reference: the module's math, unfolded, in f32.
    # (self.softmax is defined by the module but never used in forward.)
    x_flat = x.reshape(B, -1)
    ref_y = (x_flat @ w1 + b1) @ w2 + b2
    ref = ref_y / jnp.maximum(
        jnp.sqrt(jnp.sum(ref_y * ref_y, axis=1, keepdims=True)), 1e-12)

    assert out.shape == (B, out_dim)
    assert jnp.allclose(out, ref, atol=1e-5, rtol=1e-5), (out, ref)

    print("KERNEL_OK")
</pallas_src>

<mosaic_0001>
module attributes {stable_mosaic.version = 11 : i64} {
  func.func @output_head_kernel(%arg0: i32, %arg1: memref<8x1024xf32, #tpu.memory_space<vmem>>, %arg2: memref<1x1024xf32, #tpu.memory_space<vmem>>, %arg3: memref<1x1xf32, #tpu.memory_space<vmem>>, %arg4: memref<8x1xf32, #tpu.memory_space<vmem>>) attributes {dimension_semantics = [#tpu.dimension_semantics<parallel>], iteration_bounds = array<i64: 1>, scalar_prefetch = 0 : i64, scratch_operands = 0 : i64, tpu.core_type = #tpu.core_type<tc>, window_params = [{transform_indices = @transform_0, window_bounds = array<i64: 8, 1024>}, {pipeline_mode = #tpu.pipeline_mode<synchronous>, transform_indices = @transform_1, window_bounds = array<i64: 1, 1024>}, {pipeline_mode = #tpu.pipeline_mode<synchronous>, transform_indices = @transform_2, window_bounds = array<i64: 1, 1>}, {transform_indices = @transform_3, window_bounds = array<i64: 8, 1>}]} {
    %c0 = arith.constant 0 : index
    %c0_0 = arith.constant 0 : index
    %0 = vector.load %arg1[%c0, %c0_0] : memref<8x1024xf32, #tpu.memory_space<vmem>>, vector<8x1024xf32>
    %c0_1 = arith.constant 0 : index
    %c0_2 = arith.constant 0 : index
    %1 = vector.load %arg2[%c0_1, %c0_2] : memref<1x1024xf32, #tpu.memory_space<vmem>>, vector<1x1024xf32>
    %2 = vector.broadcast %1 : vector<1x1024xf32> to vector<8x1024xf32>
    %3 = arith.mulf %0, %2 : vector<8x1024xf32>
    %cst = arith.constant dense<0.000000e+00> : vector<8xf32>
    %4 = vector.multi_reduction <add>, %3, %cst [1] : vector<8x1024xf32> to vector<8xf32>
    %5 = vector.shape_cast %4 : vector<8xf32> to vector<8x1xf32>
    %c0_3 = arith.constant 0 : index
    %c0_4 = arith.constant 0 : index
    %6 = vector.load %arg3[%c0_3, %c0_4] : memref<1x1xf32, #tpu.memory_space<vmem>>, vector<1x1xf32>
    %7 = vector.broadcast %6 : vector<1x1xf32> to vector<8x1xf32>
    %8 = arith.addf %5, %7 : vector<8x1xf32>
    %9 = math.absf %8 : vector<8x1xf32>
    %cst_5 = arith.constant 9.99999996E-13 : f32
    %10 = vector.broadcast %cst_5 : f32 to vector<8x1xf32>
    %11 = arith.maximumf %9, %10 : vector<8x1xf32>
    %12 = arith.divf %8, %11 : vector<8x1xf32>
    %c0_6 = arith.constant 0 : index
    %c0_7 = arith.constant 0 : index
    %13 = vector.load %arg4[%c0_6, %c0_7] : memref<8x1xf32, #tpu.memory_space<vmem>>, vector<8x1xf32>
    tpu.vector_store %arg4[%c0_6, %c0_7], %12 {strides = array<i32>} : memref<8x1xf32, #tpu.memory_space<vmem>>, vector<8x1xf32>,
    return
  }
  func.func @transform_0(%arg0: i32) -> (i32, i32) {
    %c0_i32 = arith.constant 0 : i32
    %c0_i32_0 = arith.constant 0 : i32
    return %arg0, %c0_i32 : i32, i32
  }
  func.func @transform_1(%arg0: i32) -> (i32, i32) {
    %c0_i32 = arith.constant 0 : i32
    %c0_i32_0 = arith.constant 0 : i32
    %c0_i32_1 = arith.constant 0 : i32
    return %c0_i32, %c0_i32_0 : i32, i32
  }
  func.func @transform_2(%arg0: i32) -> (i32, i32) {
    %c0_i32 = arith.constant 0 : i32
    %c0_i32_0 = arith.constant 0 : i32
    %c0_i32_1 = arith.constant 0 : i32
    return %c0_i32, %c0_i32_0 : i32, i32
  }
  func.func @transform_3(%arg0: i32) -> (i32, i32) {
    %c0_i32 = arith.constant 0 : i32
    %c0_i32_0 = arith.constant 0 : i32
    return %arg0, %c0_i32 : i32, i32
  }
}

</mosaic_0001>

<llo_original>
// kernel: output_head_forward.1
$region0: #{output_head_forward.1}
  #allocation0 [shape = 'u32[]', space=smem, size = 0x4, offset = 0x4, fixed_abs, tag = 'smem constant byte address 0x4 - core index']
  #allocation1 [shape = 'u32[144,128]{1,0:T(1,128)}', space=vmem, size = 0x12000, scoped, tag = 'internal scratch']
  #allocation2 [shape = 'f32[1,1]{1,0:T(1,128)S(1)}', space=vmem, size = 0x200, scoped, tag = 'scoped memory for output_head_forward.1']
  %s0 = inlined_call_operand.vmem [shape: f32[8,1024], index: 0, kind: input, shape index: {}]
  %s1 = inlined_call_operand.vmem [shape: f32[1,1024], index: 1, kind: input, shape index: {}]
  %s2 = inlined_call_operand.<no memory space> [shape: f32[1,1], index: 2, kind: input, shape index: {}]
  %s3 = inlined_call_operand.vmem [shape: f32[8,1], index: 3, kind: output, shape index: {}]
  %s4 = sld [smem:[#allocation0]]
  $region22: #{output_head_forward.1} parent=0
    _
  %s6 = ssub.s32 1, %s4
  %s7 = scalar_select 0, %s6, %s4
  %v8 = vstv %s2
  %9 = vst [vmem:[#allocation2] sm:$0x1] %v8
  // Predicated region
  $region2: #{output_head_forward.1} parent=0 // pred_check
    _
  $region3: #{output_head_forward.1} parent=0 // pred_check_branch
    %11 = sbr.rel (0) target = $region5
  $region4: #{output_head_forward.1} parent=0 // pred_region
    _
  $region5: #{output_head_forward.1} parent=0 // pred_fallthru
    _
  // Predicated region
  $region6: #{output_head_forward.1} parent=0 // pred_check
    _
  $region7: #{output_head_forward.1} parent=0 // pred_check_branch
    %13 = sbr.rel (0) target = $region9
  $region8: #{output_head_forward.1} parent=0 // pred_region
    _
  $region9: #{output_head_forward.1} parent=0 // pred_fallthru
    _
  // Predicated region
  $region10: #{output_head_forward.1} parent=0 // pred_check
    _
  $region11: #{output_head_forward.1} parent=0 // pred_check_branch
    %15 = sbr.rel (0) target = $region13
  $region12: #{output_head_forward.1} parent=0 // pred_region
    _
  $region13: #{output_head_forward.1} parent=0 // pred_fallthru
    _
  %v16 = vld [vmem:[%s0] sm:$0xff]
  %v17 = vld [vmem:[%s0 + $0x8] sm:$0xff]
  %v18 = vld [vmem:[%s0 + $0x10] sm:$0xff]
  %v19 = vld [vmem:[%s0 + $0x18] sm:$0xff]
  %v20 = vld [vmem:[%s0 + $0x20] sm:$0xff]
  %v21 = vld [vmem:[%s0 + $0x28] sm:$0xff]
  %v22 = vld [vmem:[%s0 + $0x30] sm:$0xff]
  %v23 = vld [vmem:[%s0 + $0x38] sm:$0xff]
  %v24 = vld [vmem:[%s1] sm:$0xff]
  %v26 = vlaneseq
  %v27 = vshrl.u32 %v26, 7
  %v28 = vsub.s32 0, %v27
  %v29 = vrot.slane %v24, %v28
  %v30 = vlaneseq
  %v31 = vshrl.u32 %v30, 7
  %v32 = vsub.s32 1, %v31
  %v33 = vrot.slane %v24, %v32
  %v34 = vlaneseq
  %v35 = vshrl.u32 %v34, 7
  %v36 = vsub.s32 2, %v35
  %v37 = vrot.slane %v24, %v36
  %v38 = vlaneseq
  %v39 = vshrl.u32 %v38, 7
  %v40 = vsub.s32 3, %v39
  %v41 = vrot.slane %v24, %v40
  %v42 = vlaneseq
  %v43 = vshrl.u32 %v42, 7
  %v44 = vsub.s32 4, %v43
  %v45 = vrot.slane %v24, %v44
  %v46 = vlaneseq
  %v47 = vshrl.u32 %v46, 7
  %v48 = vsub.s32 5, %v47
  %v49 = vrot.slane %v24, %v48
  %v50 = vlaneseq
  %v51 = vshrl.u32 %v50, 7
  %v52 = vsub.s32 6, %v51
  %v53 = vrot.slane %v24, %v52
  %v54 = vlaneseq
  %v55 = vshrl.u32 %v54, 7
  %v56 = vsub.s32 7, %v55
  %v57 = vrot.slane %v24, %v56
  %v66 = vmul.f32 %v16, %v29
  %v67 = vmul.f32 %v17, %v33
  %v68 = vmul.f32 %v18, %v37
  %v69 = vmul.f32 %v19, %v41
  %v70 = vmul.f32 %v20, %v45
  %v71 = vmul.f32 %v21, %v49
  %v72 = vmul.f32 %v22, %v53
  %v73 = vmul.f32 %v23, %v57
  %v74 = vadd.f32 %v66, %v67
  %v75 = vadd.f32 %v74, %v68
  %v76 = vadd.f32 %v75, %v69
  %v77 = vadd.f32 %v76, %v70
  %v78 = vadd.f32 %v77, %v71
  %v79 = vadd.f32 %v78, %v72
  %v80 = vadd.f32 %v79, %v73
  %81 = vadd.xlane.f32.xlu0 %v80
  %v82 = vpop.xlane.xlu0 %81
  %v83 = vld [vmem:[#allocation2] sm:$0x1]
  %v85 = vlaneseq
  %v86 = vshrl.u32 %v85, 7
  %v87 = vsub.s32 0, %v86
  %v88 = vrot.slane %v83, %v87
  %v90 = vadd.f32 %v82, %v88
  %v91 = vand.u32 2147483647, %v90
  %v92 = vmax.f32 %v91, 1e-12
  %v93 = vrcp.pop %v92
  %v94 = vmul.f32 %v90, %v93
  %vm95 = vcmask 7168
  %96 = vst.msk [vmem:[%s3] sm:$0xff] %vm95, %v94
  // Predicated region
  $region14: #{output_head_forward.1} parent=0 // pred_check
    _
  $region15: #{output_head_forward.1} parent=0 // pred_check_branch
    %98 = sbr.rel (0) target = $region17
  $region16: #{output_head_forward.1} parent=0 // pred_region
    _
  $region17: #{output_head_forward.1} parent=0 // pred_fallthru
    _
  // Predicated region
  $region18: #{output_head_forward.1} parent=0 // pred_check
    _
  $region19: #{output_head_forward.1} parent=0 // pred_check_branch
    %100 = sbr.rel (0) target = $region21
  $region20: #{output_head_forward.1} parent=0 // pred_region
    _
  $region21: #{output_head_forward.1} parent=0 // pred_fallthru
    _

</llo_original>
